<compile_context>
chip_gen: v5e
topology: v5e:2x2
jax: 0.10.0
libtpu: 0.0.40
codegen_flags: <defaults>
</compile_context>

<pallas_src>
import functools

import jax
import jax.numpy as jnp
from jax import lax
from jax.experimental import pallas as pl
from jax.experimental.pallas import tpu as pltpu

EPS = 1e-12


def _self_output_kernel(h_ref, x_ref, w_ref, b_ref, gamma_ref, beta_ref, o_ref):
    """One (TR, H) row tile: dense + bias + residual + LayerNorm."""
    # dense: MXU matmul in the operands' native dtype, f32 accumulation
    y = jnp.dot(h_ref[...], w_ref[...], preferred_element_type=jnp.float32)
    y = y + b_ref[...].astype(jnp.float32)                    # (TR,H) + (1,H)

    # dropout: identity in inference mode
    # TODO(synk): training-mode dropout would use pltpu.prng_seed + stateful_bernoulli.

    # residual + LayerNorm (TF style, eps inside the sqrt); statistics in f32.
    # Both moments come straight from z (var = E[z^2] - mean^2), so there is
    # no extra (TR,H) pass forming (z - mean) before the second reduction.
    z = y + x_ref[...].astype(jnp.float32)
    inv_h = jnp.float32(1.0 / z.shape[-1])
    mean = jnp.sum(z, axis=-1, keepdims=True) * inv_h
    mean_sq = jnp.sum(z * z, axis=-1, keepdims=True) * inv_h
    var = jnp.maximum(mean_sq - mean * mean, 0.0)             # guard fp cancellation
    inv = lax.rsqrt(var + jnp.float32(EPS))                   # rsqrt -> EUP slot
    out = (z - mean) * inv * gamma_ref[...].astype(jnp.float32) \
          + beta_ref[...].astype(jnp.float32)
    o_ref[...] = out.astype(o_ref.dtype)


def _round_up(x, m):
    return ((x + m - 1) // m) * m


def _sublane_multiple(itemsize):
    # Native sublane tile height: 8 rows for 4-byte, 16 for 2-byte, 32 for
    # 1-byte dtypes (sub-32-bit dtypes pack along sublanes).
    return {4: 8, 2: 16, 1: 32}.get(itemsize, 8)


def _pick_tile_rows(rows, sub):
    if rows < 2 * sub:
        return rows                      # single full-extent block
    # >= 2 grid steps so v7x megacore can split the 'parallel' axis; cap the
    # tile at 512 rows (mem-bound sweet spot that also fits v7x's 64 MiB VMEM).
    return max(min(512, _round_up(pl.cdiv(rows, 2), sub)), sub)


@functools.partial(jax.jit, static_argnames=("tile_rows",))
def _self_output_2d(hidden_states, input_tensor, w, b, gamma, beta, tile_rows):
    rows, hidden = hidden_states.shape
    grid = (pl.cdiv(rows, tile_rows),)   # natural partial last block; no pad/slice

    # Bias / LN params as (1, H) lane-major f32 tiles.
    b2 = b.reshape(1, hidden).astype(jnp.float32)
    gamma2 = gamma.reshape(1, hidden).astype(jnp.float32)
    beta2 = beta.reshape(1, hidden).astype(jnp.float32)

    act_bytes = jnp.dtype(hidden_states.dtype).itemsize
    res_bytes = jnp.dtype(input_tensor.dtype).itemsize
    w_bytes = jnp.dtype(w.dtype).itemsize
    out_bytes = res_bytes

    # VMEM estimate: double-buffered weight (a constant index_map still gets
    # two buffers by default), double-buffered h/x/out tiles, f32 LN
    # intermediates, and the small param rows.
    est = (2 * hidden * hidden * w_bytes
           + 2 * tile_rows * hidden * (act_bytes + res_bytes + out_bytes)
           + 3 * tile_rows * hidden * 4
           + 4 * hidden * 4)
    try:
        vmem_cap = int(pltpu.get_tpu_info().vmem_capacity_bytes)
    except Exception:
        vmem_cap = 64 << 20              # conservative fallback: v7x per-TC VMEM
    vmem_limit = int(min(max(2 * est, 16 << 20), (vmem_cap * 3) // 4))

    cost = pl.CostEstimate(
        flops=2 * rows * hidden * hidden + 8 * rows * hidden,
        transcendentals=rows,
        bytes_accessed=(rows * hidden * (act_bytes + res_bytes + out_bytes)
                        + hidden * hidden * w_bytes),
    )

    # Constant index_map => the weight / params are DMA'd only once and stay
    # resident across the whole grid. (Single-buffering them via
    # pipeline_mode=pl.Buffered(1) would halve the weight's VMEM footprint;
    # left at the default for lowering portability and accounted for in `est`.)
    const_block = lambda shape: pl.BlockSpec(shape, lambda i: (0, 0))

    return pl.pallas_call(
        _self_output_kernel,
        out_shape=jax.ShapeDtypeStruct((rows, hidden), input_tensor.dtype),
        grid_spec=pltpu.PrefetchScalarGridSpec(
            num_scalar_prefetch=0,
            grid=grid,
            in_specs=[
                pl.BlockSpec((tile_rows, hidden), lambda i: (i, 0)),  # hidden_states
                pl.BlockSpec((tile_rows, hidden), lambda i: (i, 0)),  # input_tensor
                const_block((hidden, hidden)),                        # W (resident)
                const_block((1, hidden)),                             # b
                const_block((1, hidden)),                             # gamma
                const_block((1, hidden)),                             # beta
            ],
            out_specs=pl.BlockSpec((tile_rows, hidden), lambda i: (i, 0)),
        ),
        compiler_params=pltpu.CompilerParams(
            dimension_semantics=("parallel",),
            vmem_limit_bytes=vmem_limit,
        ),
        cost_estimate=cost,
    )(hidden_states, input_tensor, w, b2, gamma2, beta2)


def self_output_forward(hidden_states, input_tensor, w, b, gamma, beta,
                        tile_rows=None, mxu_bf16=False):
    """SelfOutput forward: LayerNorm(hidden_states @ w + b + input_tensor).

    `w` is stored as [in_features, out_features] (torch weight transposed) so
    the kernel does a plain row-major matmul. `mxu_bf16=True` casts only the
    matmul operands to bf16 (recommended on v5e, which is MXU-bound for large
    hidden); bias / residual / LayerNorm stay in f32 inside the kernel.
    """
    orig_shape = hidden_states.shape
    hidden = orig_shape[-1]
    h2d = hidden_states.reshape(-1, hidden)
    x2d = input_tensor.reshape(-1, hidden)
    rows = h2d.shape[0]

    # Normalize MXU operand dtypes explicitly (mixed dtypes would otherwise
    # silently promote the dot and lose the narrow MXU path).
    op_dtype = jnp.bfloat16 if mxu_bf16 else h2d.dtype
    h2d = h2d.astype(op_dtype)
    w = w.astype(op_dtype)

    if tile_rows is None:
        sub = max(_sublane_multiple(jnp.dtype(op_dtype).itemsize),
                  _sublane_multiple(jnp.dtype(x2d.dtype).itemsize))
        tile_rows = _pick_tile_rows(rows, sub)

    out = _self_output_2d(h2d, x2d, w, b, gamma, beta, int(tile_rows))
    return out.reshape(orig_shape)


def reference_forward(hidden_states, input_tensor, w, b, gamma, beta):
    y = jnp.dot(hidden_states, w, preferred_element_type=jnp.float32) + b
    z = y + input_tensor
    u = jnp.mean(z, -1, keepdims=True)
    s = jnp.mean((z - u) ** 2, -1, keepdims=True)
    return gamma * (z - u) / jnp.sqrt(s + EPS) + beta


if __name__ == "__main__":
    batch, seq, hidden = 2, 8, 32
    key = jax.random.PRNGKey(0)
    k0, k1, k2, k3 = jax.random.split(key, 4)

    # deterministic "nn.Linear"-style parameter init
    bound = 1.0 / (hidden ** 0.5)
    w = jax.random.uniform(k1, (hidden, hidden), jnp.float32, -bound, bound)
    b = jax.random.uniform(k2, (hidden,), jnp.float32, -bound, bound)
    gamma = jnp.ones((hidden,), jnp.float32)
    beta = jnp.zeros((hidden,), jnp.float32)

    hidden_states = jax.random.normal(k0, (batch, seq, hidden), jnp.float32)
    input_tensor = jax.random.normal(k3, (batch, seq, hidden), jnp.float32)

    out = self_output_forward(hidden_states, input_tensor, w, b, gamma, beta)
    out = jax.block_until_ready(out)

    ref = reference_forward(hidden_states, input_tensor, w, b, gamma, beta)
    assert out.shape == (batch, seq, hidden)
    # Tolerance covers MXU default-precision differences between the Pallas
    # matmul and the XLA reference matmul for f32 operands.
    max_err = float(jnp.max(jnp.abs(out - ref)))
    assert max_err < 5e-3, max_err

    print("KERNEL_OK")
</pallas_src>

<mosaic_0001>
module attributes {stable_mosaic.version = 11 : i64} {
  func.func @_self_output_kernel(%arg0: i32, %arg1: memref<8x32xf32, #tpu.memory_space<vmem>>, %arg2: memref<8x32xf32, #tpu.memory_space<vmem>>, %arg3: memref<32x32xf32, #tpu.memory_space<vmem>>, %arg4: memref<1x32xf32, #tpu.memory_space<vmem>>, %arg5: memref<1x32xf32, #tpu.memory_space<vmem>>, %arg6: memref<1x32xf32, #tpu.memory_space<vmem>>, %arg7: memref<8x32xf32, #tpu.memory_space<vmem>>) attributes {dimension_semantics = [#tpu.dimension_semantics<parallel>], iteration_bounds = array<i64: 2>, scalar_prefetch = 0 : i64, scratch_operands = 0 : i64, tpu.core_type = #tpu.core_type<tc>, window_params = [{transform_indices = @transform_0, window_bounds = array<i64: 8, 32>}, {transform_indices = @transform_1, window_bounds = array<i64: 8, 32>}, {pipeline_mode = #tpu.pipeline_mode<synchronous>, transform_indices = @transform_2, window_bounds = array<i64: 32, 32>}, {pipeline_mode = #tpu.pipeline_mode<synchronous>, transform_indices = @transform_3, window_bounds = array<i64: 1, 32>}, {pipeline_mode = #tpu.pipeline_mode<synchronous>, transform_indices = @transform_4, window_bounds = array<i64: 1, 32>}, {pipeline_mode = #tpu.pipeline_mode<synchronous>, transform_indices = @transform_5, window_bounds = array<i64: 1, 32>}, {transform_indices = @transform_6, window_bounds = array<i64: 8, 32>}]} {
    %c0 = arith.constant 0 : index
    %c0_0 = arith.constant 0 : index
    %0 = vector.load %arg1[%c0, %c0_0] : memref<8x32xf32, #tpu.memory_space<vmem>>, vector<8x32xf32>
    %c0_1 = arith.constant 0 : index
    %c0_2 = arith.constant 0 : index
    %1 = vector.load %arg3[%c0_1, %c0_2] : memref<32x32xf32, #tpu.memory_space<vmem>>, vector<32x32xf32>
    %cst = arith.constant dense<0.000000e+00> : vector<8x32xf32>
    %2 = tpu.matmul %0, %1, %cst {dimension_numbers = #tpu.dot_dimension_numbers<[1], [0], [0], [1], [0, 0, 1, 1], [], []>} : vector<8x32xf32>, vector<32x32xf32>, vector<8x32xf32> -> vector<8x32xf32>
    %c0_3 = arith.constant 0 : index
    %c0_4 = arith.constant 0 : index
    %3 = vector.load %arg4[%c0_3, %c0_4] : memref<1x32xf32, #tpu.memory_space<vmem>>, vector<1x32xf32>
    %4 = vector.broadcast %3 : vector<1x32xf32> to vector<8x32xf32>
    %5 = arith.addf %2, %4 : vector<8x32xf32>
    %c0_5 = arith.constant 0 : index
    %c0_6 = arith.constant 0 : index
    %6 = vector.load %arg2[%c0_5, %c0_6] : memref<8x32xf32, #tpu.memory_space<vmem>>, vector<8x32xf32>
    %7 = arith.addf %5, %6 : vector<8x32xf32>
    %cst_7 = arith.constant dense<0.000000e+00> : vector<8xf32>
    %8 = vector.multi_reduction <add>, %7, %cst_7 [1] : vector<8x32xf32> to vector<8xf32>
    %9 = vector.shape_cast %8 : vector<8xf32> to vector<8x1xf32>
    %cst_8 = arith.constant 3.125000e-02 : f32
    %10 = vector.broadcast %cst_8 : f32 to vector<8x1xf32>
    %11 = arith.mulf %9, %10 : vector<8x1xf32>
    %12 = arith.mulf %7, %7 : vector<8x32xf32>
    %cst_9 = arith.constant dense<0.000000e+00> : vector<8xf32>
    %13 = vector.multi_reduction <add>, %12, %cst_9 [1] : vector<8x32xf32> to vector<8xf32>
    %14 = vector.shape_cast %13 : vector<8xf32> to vector<8x1xf32>
    %cst_10 = arith.constant 3.125000e-02 : f32
    %15 = vector.broadcast %cst_10 : f32 to vector<8x1xf32>
    %16 = arith.mulf %14, %15 : vector<8x1xf32>
    %17 = arith.mulf %11, %11 : vector<8x1xf32>
    %18 = arith.subf %16, %17 : vector<8x1xf32>
    %cst_11 = arith.constant 0.000000e+00 : f32
    %19 = vector.broadcast %cst_11 : f32 to vector<8x1xf32>
    %20 = arith.maximumf %18, %19 : vector<8x1xf32>
    %cst_12 = arith.constant 9.99999996E-13 : f32
    %21 = vector.broadcast %cst_12 : f32 to vector<8x1xf32>
    %22 = arith.addf %20, %21 : vector<8x1xf32>
    %23 = math.rsqrt %22 : vector<8x1xf32>
    %24 = vector.broadcast %11 : vector<8x1xf32> to vector<8x32xf32>
    %25 = arith.subf %7, %24 : vector<8x32xf32>
    %26 = vector.broadcast %23 : vector<8x1xf32> to vector<8x32xf32>
    %27 = arith.mulf %25, %26 : vector<8x32xf32>
    %c0_13 = arith.constant 0 : index
    %c0_14 = arith.constant 0 : index
    %28 = vector.load %arg5[%c0_13, %c0_14] : memref<1x32xf32, #tpu.memory_space<vmem>>, vector<1x32xf32>
    %29 = vector.broadcast %28 : vector<1x32xf32> to vector<8x32xf32>
    %30 = arith.mulf %27, %29 : vector<8x32xf32>
    %c0_15 = arith.constant 0 : index
    %c0_16 = arith.constant 0 : index
    %31 = vector.load %arg6[%c0_15, %c0_16] : memref<1x32xf32, #tpu.memory_space<vmem>>, vector<1x32xf32>
    %32 = vector.broadcast %31 : vector<1x32xf32> to vector<8x32xf32>
    %33 = arith.addf %30, %32 : vector<8x32xf32>
    %c0_17 = arith.constant 0 : index
    %c0_18 = arith.constant 0 : index
    %34 = vector.load %arg7[%c0_17, %c0_18] : memref<8x32xf32, #tpu.memory_space<vmem>>, vector<8x32xf32>
    tpu.vector_store %arg7[%c0_17, %c0_18], %33 {strides = array<i32>} : memref<8x32xf32, #tpu.memory_space<vmem>>, vector<8x32xf32>,
    return
  }
  func.func @transform_0(%arg0: i32) -> (i32, i32) {
    %c0_i32 = arith.constant 0 : i32
    %c0_i32_0 = arith.constant 0 : i32
    return %arg0, %c0_i32 : i32, i32
  }
  func.func @transform_1(%arg0: i32) -> (i32, i32) {
    %c0_i32 = arith.constant 0 : i32
    %c0_i32_0 = arith.constant 0 : i32
    return %arg0, %c0_i32 : i32, i32
  }
  func.func @transform_2(%arg0: i32) -> (i32, i32) {
    %c0_i32 = arith.constant 0 : i32
    %c0_i32_0 = arith.constant 0 : i32
    %c0_i32_1 = arith.constant 0 : i32
    return %c0_i32, %c0_i32_0 : i32, i32
  }
  func.func @transform_3(%arg0: i32) -> (i32, i32) {
    %c0_i32 = arith.constant 0 : i32
    %c0_i32_0 = arith.constant 0 : i32
    %c0_i32_1 = arith.constant 0 : i32
    return %c0_i32, %c0_i32_0 : i32, i32
  }
  func.func @transform_4(%arg0: i32) -> (i32, i32) {
    %c0_i32 = arith.constant 0 : i32
    %c0_i32_0 = arith.constant 0 : i32
    %c0_i32_1 = arith.constant 0 : i32
    return %c0_i32, %c0_i32_0 : i32, i32
  }
  func.func @transform_5(%arg0: i32) -> (i32, i32) {
    %c0_i32 = arith.constant 0 : i32
    %c0_i32_0 = arith.constant 0 : i32
    %c0_i32_1 = arith.constant 0 : i32
    return %c0_i32, %c0_i32_0 : i32, i32
  }
  func.func @transform_6(%arg0: i32) -> (i32, i32) {
    %c0_i32 = arith.constant 0 : i32
    %c0_i32_0 = arith.constant 0 : i32
    return %arg0, %c0_i32 : i32, i32
  }
}

</mosaic_0001>

<llo_original>
// kernel: _self_output_2d.1
$region0: #{_self_output_2d.1}
  #allocation0 [shape = 'u32[]', space=smem, size = 0x4, offset = 0x4, fixed_abs, tag = 'smem constant byte address 0x4 - core index']
  #allocation1 [shape = 'u32[72,128]{1,0:T(1,128)}', space=vmem, size = 0x9000, scoped, tag = 'internal scratch']
  %s0 = inlined_call_operand.hbm [shape: f32[16,32], index: 0, kind: input, shape index: {}]
  %s1 = inlined_call_operand.hbm [shape: f32[16,32], index: 1, kind: input, shape index: {}]
  %s2 = inlined_call_operand.hbm [shape: f32[32,32], index: 2, kind: input, shape index: {}]
  %s3 = inlined_call_operand.vmem [shape: f32[1,32], index: 3, kind: input, shape index: {}]
  %s4 = inlined_call_operand.vmem [shape: f32[1,32], index: 4, kind: input, shape index: {}]
  %s5 = inlined_call_operand.vmem [shape: f32[1,32], index: 5, kind: input, shape index: {}]
  %s6 = inlined_call_operand.hbm [shape: f32[16,32], index: 6, kind: output, shape index: {}]
  %s7 = sld [smem:[#allocation0]]
  $region69: #{_self_output_2d.1} parent=0
    _
  %s9 = ssub.s32 1, %s7
  %s10 = scalar_select 0, %s9, %s7
  $region1: #{_self_output_2d.1} parent=0
    #allocation2 [shape = 'u8[8192]{0}', space=vmem, size = 0x2000, scoped, tag = 'input window, operand 0']
    #allocation3 [shape = 's32[2]{0}', space=sflag, size = 0x8, scoped, tag = 'scoped memory for _self_output_2d.1']
    #allocation4 [shape = 's32[2]{0}', space=sflag, size = 0x8, scoped, tag = 'scoped memory for _self_output_2d.1']
    #allocation5 [shape = 'u8[8192]{0}', space=vmem, size = 0x2000, scoped, tag = 'input window, operand 1']
    #allocation6 [shape = 's32[2]{0}', space=sflag, size = 0x8, scoped, tag = 'scoped memory for _self_output_2d.1']
    #allocation7 [shape = 'u8[16384]{0}', space=vmem, size = 0x4000, scoped, tag = 'input window, operand 2, single buffered']
    #allocation8 [shape = 'u8[8192]{0}', space=vmem, size = 0x2000, scoped, tag = 'output window, operand 0']
    %11 = vsyncpa [#allocation3], 0
    %s12 = scalar_lea.sflag [#allocation3], 1
    %13 = vsyncpa %s12, 0
    %14 = vsyncpa [#allocation6], 0
    %s15 = scalar_lea.sflag [#allocation6], 1
    %16 = vsyncpa %s15, 0
    %17 = vsyncpa [#allocation4], 0
    %s18 = scalar_lea.sflag [#allocation4], 1
    %19 = vsyncpa %s18, 0
    loop: start=0, step=1, limit=4
    $region2: #{_self_output_2d.1} parent=1 // loop_pre_header
      _
    $region3: #{_self_output_2d.1} parent=1 // loop_header
      %s21 = sphi 0, %s25
      %p22 = scmp.ge.s32.totalorder %s21, 4
      %s31 = sphi 0, %s33
      %s34 = sphi 0, %s31
      %s35 = sphi 0, %s34
      %s51 = sphi 0, %s35
      %s57 = sphi 0, %s59
      %s60 = sphi 0, %s57
      %s61 = sphi 0, %s60
      %s77 = sphi 0, %s61
      %s81 = sphi 0, %s81
      %s83 = sphi 0, %s81
      %s84 = sphi 0, %s83
      %s98 = sphi 0, %s84
      %s102 = sphi 0, %s102
      %s104 = sphi 0, %s102
      %s105 = sphi 0, %s104
      %s119 = sphi 0, %s105
      %s123 = sphi 0, %s123
      %s125 = sphi 0, %s123
      %s126 = sphi 0, %s125
      %s140 = sphi 0, %s126
      %s144 = sphi 0, %s144
      %s146 = sphi 0, %s144
      %s147 = sphi 0, %s146
      %s161 = sphi 0, %s147
      %s167 = sphi 0, %s169
      %s170 = sphi 0, %s167
      %s171 = sphi 0, %s170
      %s187 = sphi 0, %s171
    $region4: #{_self_output_2d.1} parent=1 // loop_header_branch
      %24 = sbr.rel (%p22) target = $region8
    $region5: #{_self_output_2d.1} parent=1 // loop_body
      %s26 = ssub.s32 %s21, 1
      %s27 = ssub.s32 %s21, 2
      %s28 = sadd.s32 %s21, 1
      %s29 = ssub.s32 %s21, %s28
      %p30 = scmp.eq.s32.totalorder %s29, 0
      %s32 = sadd.s32 %s31, 1
      %s33 = scalar_select %p30, %s31, %s32
      %p36 = pneg %p30
      %p37 = scmp.eq.s32.totalorder %s21, 1
      %p38 = por %p36, %p37
      %p39 = scmp.ne.s32.totalorder %s31, %s34
      %p40 = scmp.eq.s32.totalorder %s21, 0
      %p41 = por %p39, %p40
      %p42 = scmp.ne.s32.totalorder %s31, %s34
      %p43 = scmp.eq.s32.totalorder %s26, 1
      %p44 = por %p42, %p43
      %p45 = scmp.ne.s32.totalorder %s34, %s35
      %p46 = scmp.eq.s32.totalorder %s26, 0
      %p47 = por %p45, %p46
      %p48 = scmp.ne.s32.totalorder %s34, %s35
      %p49 = scmp.eq.s32.totalorder %s27, 1
      %p50 = por %p48, %p49
      %p52 = scmp.ne.s32.totalorder %s35, %s51
      %p53 = scmp.eq.s32.totalorder %s27, 0
      %p54 = por %p52, %p53
      %s55 = ssub.s32 %s21, %s28
      %p56 = scmp.eq.s32.totalorder %s55, 0
      %s58 = sadd.s32 %s57, 1
      %s59 = scalar_select %p56, %s57, %s58
      %p62 = pneg %p56
      %p63 = scmp.eq.s32.totalorder %s21, 1
      %p64 = por %p62, %p63
      %p65 = scmp.ne.s32.totalorder %s57, %s60
      %p66 = scmp.eq.s32.totalorder %s21, 0
      %p67 = por %p65, %p66
      %p68 = scmp.ne.s32.totalorder %s57, %s60
      %p69 = scmp.eq.s32.totalorder %s26, 1
      %p70 = por %p68, %p69
      %p71 = scmp.ne.s32.totalorder %s60, %s61
      %p72 = scmp.eq.s32.totalorder %s26, 0
      %p73 = por %p71, %p72
      %p74 = scmp.ne.s32.totalorder %s60, %s61
      %p75 = scmp.eq.s32.totalorder %s27, 1
      %p76 = por %p74, %p75
      %p78 = scmp.ne.s32.totalorder %s61, %s77
      %p79 = scmp.eq.s32.totalorder %s27, 0
      %p80 = por %p78, %p79
      %s82 = sadd.s32 %s81, 1
      %p85 = scmp.eq.s32.totalorder %s21, 1
      %p86 = scmp.ne.s32.totalorder %s81, %s83
      %p87 = scmp.eq.s32.totalorder %s21, 0
      %p88 = por %p86, %p87
      %p89 = scmp.ne.s32.totalorder %s81, %s83
      %p90 = scmp.eq.s32.totalorder %s26, 1
      %p91 = por %p89, %p90
      %p92 = scmp.ne.s32.totalorder %s83, %s84
      %p93 = scmp.eq.s32.totalorder %s26, 0
      %p94 = por %p92, %p93
      %p95 = scmp.ne.s32.totalorder %s83, %s84
      %p96 = scmp.eq.s32.totalorder %s27, 1
      %p97 = por %p95, %p96
      %p99 = scmp.ne.s32.totalorder %s84, %s98
      %p100 = scmp.eq.s32.totalorder %s27, 0
      %p101 = por %p99, %p100
      %s103 = sadd.s32 %s102, 1
      %p106 = scmp.eq.s32.totalorder %s21, 1
      %p107 = scmp.ne.s32.totalorder %s102, %s104
      %p108 = scmp.eq.s32.totalorder %s21, 0
      %p109 = por %p107, %p108
      %p110 = scmp.ne.s32.totalorder %s102, %s104
      %p111 = scmp.eq.s32.totalorder %s26, 1
      %p112 = por %p110, %p111
      %p113 = scmp.ne.s32.totalorder %s104, %s105
      %p114 = scmp.eq.s32.totalorder %s26, 0
      %p115 = por %p113, %p114
      %p116 = scmp.ne.s32.totalorder %s104, %s105
      %p117 = scmp.eq.s32.totalorder %s27, 1
      %p118 = por %p116, %p117
      %p120 = scmp.ne.s32.totalorder %s105, %s119
      %p121 = scmp.eq.s32.totalorder %s27, 0
      %p122 = por %p120, %p121
      %s124 = sadd.s32 %s123, 1
      %p127 = scmp.eq.s32.totalorder %s21, 1
      %p128 = scmp.ne.s32.totalorder %s123, %s125
      %p129 = scmp.eq.s32.totalorder %s21, 0
      %p130 = por %p128, %p129
      %p131 = scmp.ne.s32.totalorder %s123, %s125
      %p132 = scmp.eq.s32.totalorder %s26, 1
      %p133 = por %p131, %p132
      %p134 = scmp.ne.s32.totalorder %s125, %s126
      %p135 = scmp.eq.s32.totalorder %s26, 0
      %p136 = por %p134, %p135
      %p137 = scmp.ne.s32.totalorder %s125, %s126
      %p138 = scmp.eq.s32.totalorder %s27, 1
      %p139 = por %p137, %p138
      %p141 = scmp.ne.s32.totalorder %s126, %s140
      %p142 = scmp.eq.s32.totalorder %s27, 0
      %p143 = por %p141, %p142
      %s145 = sadd.s32 %s144, 1
      %p148 = scmp.eq.s32.totalorder %s21, 1
      %p149 = scmp.ne.s32.totalorder %s144, %s146
      %p150 = scmp.eq.s32.totalorder %s21, 0
      %p151 = por %p149, %p150
      %p152 = scmp.ne.s32.totalorder %s144, %s146
      %p153 = scmp.eq.s32.totalorder %s26, 1
      %p154 = por %p152, %p153
      %p155 = scmp.ne.s32.totalorder %s146, %s147
      %p156 = scmp.eq.s32.totalorder %s26, 0
      %p157 = por %p155, %p156
      %p158 = scmp.ne.s32.totalorder %s146, %s147
      %p159 = scmp.eq.s32.totalorder %s27, 1
      %p160 = por %p158, %p159
      %p162 = scmp.ne.s32.totalorder %s147, %s161
      %p163 = scmp.eq.s32.totalorder %s27, 0
      %p164 = por %p162, %p163
      %s165 = ssub.s32 %s21, %s28
      %p166 = scmp.eq.s32.totalorder %s165, 0
      %s168 = sadd.s32 %s167, 1
      %s169 = scalar_select %p166, %s167, %s168
      %p172 = pneg %p166
      %p173 = scmp.eq.s32.totalorder %s21, 1
      %p174 = por %p172, %p173
      %p175 = scmp.ne.s32.totalorder %s167, %s170
      %p176 = scmp.eq.s32.totalorder %s21, 0
      %p177 = por %p175, %p176
      %p178 = scmp.ne.s32.totalorder %s167, %s170
      %p179 = scmp.eq.s32.totalorder %s26, 1
      %p180 = por %p178, %p179
      %p181 = scmp.ne.s32.totalorder %s170, %s171
      %p182 = scmp.eq.s32.totalorder %s26, 0
      %p183 = por %p181, %p182
      %p184 = scmp.ne.s32.totalorder %s170, %s171
      %p185 = scmp.eq.s32.totalorder %s27, 1
      %p186 = por %p184, %p185
      %p188 = scmp.ne.s32.totalorder %s171, %s187
      %p189 = scmp.eq.s32.totalorder %s27, 0
      %p190 = por %p188, %p189
      %p191 = scmp.le.s32.totalorder 1, %s21
      %p192 = scmp.lt.s32.totalorder %s21, 3
      %p193 = pnand %p191, %p192
      %p194 = pneg %p193
      // Predicated region
      $region9: #{_self_output_2d.1} parent=5 // pred_check
        _
      $region10: #{_self_output_2d.1} parent=5 // pred_check_branch
        %196 = sbr.rel (%p193) target = $region12
      $region11: #{_self_output_2d.1} parent=5 // pred_region
        %s197 = ssub.s32 %s21, 1
        // Predicated region
        $region13: #{_self_output_2d.1} parent=11 // pred_check
          %p198 = pneg %p94
        $region14: #{_self_output_2d.1} parent=11 // pred_check_branch
          %200 = sbr.rel (%p198) target = $region16
        $region15: #{_self_output_2d.1} parent=11 // pred_region
          %202 = vsyncadd [#allocation6], 0
          %s203 = sshll.u32 %s2, 4
          %s204 = int_to_ptr.hbm [resolvable:$true] %s203
          %s205 = sshll.u32 [#allocation7], 4
          %s206 = int_to_ptr.vmem [resolvable:$true] %s205
          %211 = dma.hbm_to_vmem [thread:$0]  %s204, 512, %s206, [#allocation6], 128, 128, 8
        $region16: #{_self_output_2d.1} parent=11 // pred_fallthru
          _
        // Predicated region
        $region17: #{_self_output_2d.1} parent=11 // pred_check
          %p212 = pneg %p115
        $region18: #{_self_output_2d.1} parent=11 // pred_check_branch
          %214 = sbr.rel (%p212) target = $region20
        $region19: #{_self_output_2d.1} parent=11 // pred_region
          _
        $region20: #{_self_output_2d.1} parent=11 // pred_fallthru
          _
        // Predicated region
        $region21: #{_self_output_2d.1} parent=11 // pred_check
          %p215 = pneg %p136
        $region22: #{_self_output_2d.1} parent=11 // pred_check_branch
          %217 = sbr.rel (%p215) target = $region24
        $region23: #{_self_output_2d.1} parent=11 // pred_region
          _
        $region24: #{_self_output_2d.1} parent=11 // pred_fallthru
          _
        // Predicated region
        $region25: #{_self_output_2d.1} parent=11 // pred_check
          %p218 = pneg %p157
        $region26: #{_self_output_2d.1} parent=11 // pred_check_branch
          %220 = sbr.rel (%p218) target = $region28
        $region27: #{_self_output_2d.1} parent=11 // pred_region
          _
        $region28: #{_self_output_2d.1} parent=11 // pred_fallthru
          _
      $region12: #{_self_output_2d.1} parent=5 // pred_fallthru
        _
      %p221 = scmp.lt.s32.totalorder %s21, 2
      // Predicated region
      $region29: #{_self_output_2d.1} parent=5 // pred_check
        %p222 = pneg %p221
      $region30: #{_self_output_2d.1} parent=5 // pred_check_branch
        %224 = sbr.rel (%p222) target = $region32
      $region31: #{_self_output_2d.1} parent=5 // pred_region
        // Predicated region
        $region33: #{_self_output_2d.1} parent=31 // pred_check
          %p225 = pneg %p41
        $region34: #{_self_output_2d.1} parent=31 // pred_check_branch
          %227 = sbr.rel (%p225) target = $region36
        $region35: #{_self_output_2d.1} parent=31 // pred_region
          %s228 = sand.u32 %s31, 1
          %s229 = scalar_lea.sflag [#allocation3], %s228
          %s230 = sand.u32 %s31, 1
          %s231 = smul.addr %s230, 8
          %s232 = scalar_lea.vmem [#allocation2], %s231
          %234 = vsyncadd %s229, 0
          %s235 = smul.addr %s21, 8
          %s236 = scalar_lea.hbm %s0, %s235
          %s238 = sshll.u32 %s236, 4
          %s239 = int_to_ptr.hbm [resolvable:$true] %s238
          %s240 = sshll.u32 %s232, 4
          %s241 = int_to_ptr.vmem [resolvable:$true] %s240
          %243 = dma.hbm_to_vmem [thread:$0]  %s239, 128, %s241, %s229
        $region36: #{_self_output_2d.1} parent=31 // pred_fallthru
          _
        // Predicated region
        $region37: #{_self_output_2d.1} parent=31 // pred_check
          %p244 = pneg %p67
        $region38: #{_self_output_2d.1} parent=31 // pred_check_branch
          %246 = sbr.rel (%p244) target = $region40
        $region39: #{_self_output_2d.1} parent=31 // pred_region
          %s247 = sand.u32 %s21, 1
          %s248 = scalar_lea.sflag [#allocation6], %s247
          %s249 = sand.u32 %s57, 1
          %s250 = smul.addr %s249, 8
          %s251 = scalar_lea.vmem [#allocation5], %s250
          %253 = vsyncadd %s248, 0
          %s254 = smul.addr %s21, 8
          %s255 = scalar_lea.hbm %s1, %s254
          %s257 = sshll.u32 %s255, 4
          %s258 = int_to_ptr.hbm [resolvable:$true] %s257
          %s259 = sshll.u32 %s251, 4
          %s260 = int_to_ptr.vmem [resolvable:$true] %s259
          %262 = dma.hbm_to_vmem [thread:$0]  %s258, 128, %s260, %s248
        $region40: #{_self_output_2d.1} parent=31 // pred_fallthru
          _
      $region32: #{_self_output_2d.1} parent=5 // pred_fallthru
        _
      %p263 = scmp.le.s32.totalorder 1, %s21
      %p264 = scmp.lt.s32.totalorder %s21, 3
      %p265 = pnand %p263, %p264
      %p266 = pneg %p265
      // Predicated region
      $region41: #{_self_output_2d.1} parent=5 // pred_check
        _
      $region42: #{_self_output_2d.1} parent=5 // pred_check_branch
        %268 = sbr.rel (%p265) target = $region44
      $region43: #{_self_output_2d.1} parent=5 // pred_region
        %s269 = ssub.s32 %s21, 1
        %s270 = sand.u32 %s34, 1
        %s271 = scalar_lea.sflag [#allocation3], %s270
        %s272 = sand.u32 %s34, 1
        %s273 = smul.addr %s272, 8
        %s274 = scalar_lea.vmem [#allocation2], %s273
        // Predicated region
        $region45: #{_self_output_2d.1} parent=43 // pred_check
          %p275 = pneg %p47
        $region46: #{_self_output_2d.1} parent=43 // pred_check_branch
          %277 = sbr.rel (%p275) target = $region48
        $region47: #{_self_output_2d.1} parent=43 // pred_region
          %279 = dma.done %s271, 128
        $region48: #{_self_output_2d.1} parent=43 // pred_fallthru
          _
        %s280 = sand.u32 %s26, 1
        %s281 = scalar_lea.sflag [#allocation6], %s280
        %s282 = sand.u32 %s60, 1
        %s283 = smul.addr %s282, 8
        %s284 = scalar_lea.vmem [#allocation5], %s283
        // Predicated region
        $region49: #{_self_output_2d.1} parent=43 // pred_check
          %p285 = pneg %p73
        $region50: #{_self_output_2d.1} parent=43 // pred_check_branch
          %287 = sbr.rel (%p285) target = $region52
        $region51: #{_self_output_2d.1} parent=43 // pred_region
          %289 = dma.done %s281, 128
        $region52: #{_self_output_2d.1} parent=43 // pred_fallthru
          _
        // Predicated region
        $region53: #{_self_output_2d.1} parent=43 // pred_check
          %p290 = pneg %p94
        $region54: #{_self_output_2d.1} parent=43 // pred_check_branch
          %292 = sbr.rel (%p290) target = $region56
        $region55: #{_self_output_2d.1} parent=43 // pred_region
          %294 = dma.done [#allocation6], 512
        $region56: #{_self_output_2d.1} parent=43 // pred_fallthru
          _
        %s295 = sand.u32 %s34, 1
        %s296 = scalar_lea.sflag [#allocation3], %s295
        %s297 = sand.u32 %s34, 1
        %s298 = smul.addr %s297, 8
        %s299 = scalar_lea.vmem [#allocation2], %s298
        %p300 = pneg %p47
        %p301 = pneg %p44
        %s302 = sand.u32 %s26, 1
        %s303 = scalar_lea.sflag [#allocation6], %s302
        %s304 = sand.u32 %s60, 1
        %s305 = smul.addr %s304, 8
        %s306 = scalar_lea.vmem [#allocation5], %s305
        %p307 = pneg %p73
        %p308 = pneg %p70
        %p309 = pneg %p94
        %p310 = pneg %p91
        %p311 = pneg %p115
        %p312 = pneg %p112
        %p313 = pneg %p136
        %p314 = pneg %p133
        %p315 = pneg %p157
        %p316 = pneg %p154
        %p317 = pneg %p183
        %p318 = pneg %p180
        %s319 = sand.u32 %s170, 1
        %s320 = scalar_lea.sflag [#allocation4], %s319
        %s321 = sand.u32 %s170, 1
        %s322 = smul.addr %s321, 8
        %s323 = scalar_lea.vmem [#allocation8], %s322
        %v324 = vld [vmem:[%s274] sm:$0xff]
        %v325 = vld [vmem:[#allocation7] sm:$0xff]
        %v326 = vld [vmem:[#allocation7 + $0x8] sm:$0xff]
        %v327 = vld [vmem:[#allocation7 + $0x10] sm:$0xff]
        %v328 = vld [vmem:[#allocation7 + $0x18] sm:$0xff]
        %v329 = vld [vmem:[%s3] sm:$0x1]
        %v331 = vperm.slane %v329, 0
        %vm333 = vcmask 261120
        %v335 = vsel %vm333, %v324, 0
        %337 = vmatpush.msra.mxu0 0.0
        %338 = vmatpush.msra.mxu0 0.0
        %339 = vmatpush.msra.mxu0 0.0
        %340 = vmatpush.msra.mxu0 0.0
        %341 = vmatpush.msra.mxu0 0.0
        %342 = vmatpush.msra.mxu0 0.0
        %343 = vmatpush.msra.mxu0 0.0
        %344 = vmatpush.msra.mxu0 0.0
        %345 = vmatpush.msra.mxu0 0.0
        %346 = vmatpush.msra.mxu0 0.0
        %347 = vmatpush.msra.mxu0 0.0
        %348 = vmatpush.msra.mxu0 0.0
        %349 = vmatpush.msra.mxu0 %v328
        %350 = vmatpush.msra.mxu0 %v327
        %351 = vmatpush.msra.mxu0 %v326
        %352 = vmatpush.msra.mxu0 %v325
        %353 = vmatmul.f32.gmra.mxu0 %v335
        %v354 = vpop.f32.mrf.mxu0
        %v355 = vadd.f32 %v331, %v354
        %356 = vdwg.mxu0
        %v357 = vld [vmem:[%s284] sm:$0xff]
        %v358 = vadd.f32 %v355, %v357
        %v359 = vsel %vm333, %v358, 0.0
        %360 = vadd.xlane.f32.xlu0 %v359
        %v361 = vpop.xlane.xlu0 %360
        %v362 = vmul.f32 %v361, 0.03125
        %v363 = vmul.f32 %v358, %v358
        %v364 = vsel %vm333, %v363, 0.0
        %365 = vadd.xlane.f32.xlu0 %v364
        %v366 = vpop.xlane.xlu0 %365
        %v367 = vmul.f32 %v366, 0.03125
        %v368 = vmul.f32 %v362, %v362
        %v369 = vsub.f32 %v367, %v368
        %v370 = vmax.f32 %v369, 0.0
        %v371 = vadd.f32 %v370, 1e-12
        %v372 = vrsqrt.pop %v371
        %v373 = vmul.f32 %v372, %v371
        %v374 = vmul.f32 %v373, %v372
        %v375 = vmul.f32 0.5, %v374
        %v376 = vsub.f32 1.5, %v375
        %v377 = vmul.f32 %v372, %v376
        %vm378 = vweird.f32 %v371
        %vm379 = vweird.f32 %v372
        %vm380 = vmor %vm378, %vm379
        %v381 = vsel %vm380, %v372, %v377
        %v382 = vsub.f32 %v358, %v362
        %v383 = vmul.f32 %v382, %v381
        %v384 = vld [vmem:[%s4] sm:$0x1]
        %v386 = vperm.slane %v384, 0
        %v388 = vmul.f32 %v383, %v386
        %v389 = vld [vmem:[%s5] sm:$0x1]
        %v391 = vperm.slane %v389, 0
        %v393 = vadd.f32 %v388, %v391
        %394 = vst.msk [vmem:[%s323] sm:$0xff] %vm333, %v393
        %s395 = sand.u32 %s170, 1
        %s396 = scalar_lea.sflag [#allocation4], %s395
        %s397 = sand.u32 %s170, 1
        %s398 = smul.addr %s397, 8
        %s399 = scalar_lea.vmem [#allocation8], %s398
        // Predicated region
        $region57: #{_self_output_2d.1} parent=43 // pred_check
          %p400 = pneg %p180
        $region58: #{_self_output_2d.1} parent=43 // pred_check_branch
          %402 = sbr.rel (%p400) target = $region60
        $region59: #{_self_output_2d.1} parent=43 // pred_region
          %404 = vsyncadd %s396, 0
          %s405 = smul.addr %s26, 8
          %s406 = scalar_lea.hbm %s6, %s405
          %s408 = sshll.u32 %s399, 4
          %s409 = int_to_ptr.vmem [resolvable:$true] %s408
          %s410 = sshll.u32 %s406, 4
          %s411 = int_to_ptr.hbm [resolvable:$true] %s410
          %413 = dma.vmem_to_hbm [thread:$0]  %s409, 128, %s411, %s396
        $region60: #{_self_output_2d.1} parent=43 // pred_fallthru
          _
      $region44: #{_self_output_2d.1} parent=5 // pred_fallthru
        _
      %p414 = scmp.le.s32.totalorder 2, %s21
      // Predicated region
      $region61: #{_self_output_2d.1} parent=5 // pred_check
        %p415 = pneg %p414
      $region62: #{_self_output_2d.1} parent=5 // pred_check_branch
        %417 = sbr.rel (%p415) target = $region64
      $region63: #{_self_output_2d.1} parent=5 // pred_region
        %s418 = ssub.s32 %s21, 2
        // Predicated region
        $region65: #{_self_output_2d.1} parent=63 // pred_check
          %p419 = pneg %p186
        $region66: #{_self_output_2d.1} parent=63 // pred_check_branch
          %421 = sbr.rel (%p419) target = $region68
        $region67: #{_self_output_2d.1} parent=63 // pred_region
          %s422 = sand.u32 %s171, 1
          %s423 = scalar_lea.sflag [#allocation4], %s422
          %s424 = sand.u32 %s171, 1
          %s425 = smul.addr %s424, 8
          %s426 = scalar_lea.vmem [#allocation8], %s425
          %428 = dma.done %s423, 128
        $region68: #{_self_output_2d.1} parent=63 // pred_fallthru
          _
      $region64: #{_self_output_2d.1} parent=5 // pred_fallthru
        _
    $region6: #{_self_output_2d.1} parent=1 // loop_footer
      %s25 = sadd.s32 1, %s21
    $region7: #{_self_output_2d.1} parent=1 // loop_footer_branch
      %20 = sbr.rel target = $region3
    $region8: #{_self_output_2d.1} parent=1 // loop_exit
      _
    %429 = vsyncpa [#allocation3], 1
    %s430 = scalar_lea.sflag [#allocation3], 1
    %431 = vsyncpa %s430, 1
    %432 = vsyncpa [#allocation6], 1
    %s433 = scalar_lea.sflag [#allocation6], 1
    %434 = vsyncpa %s433, 1
    %435 = vsyncpa [#allocation4], 1
    %s436 = scalar_lea.sflag [#allocation4], 1
    %437 = vsyncpa %s436, 1

</llo_original>
